<compile_context>
chip_gen: v7x
topology: tpu7x:2x2x1
jax: 0.10.0
libtpu: 0.0.40
codegen_flags: <defaults>
</compile_context>

<pallas_src>
import functools

import jax
import jax.numpy as jnp
from jax import lax
from jax.experimental import pallas as pl
from jax.experimental.pallas import tpu as pltpu


LANES = 128  # TPU lane width


def _round_up(x, m):
    return ((x + m - 1) // m) * m


def _pick_tk(D, max_cols):
    """Contraction tile: multiple of 128, <= max_cols, preferring an exact
    divisor of D so the wrapper does not have to zero-pad the feature dim."""
    max_cols = max(LANES, (max_cols // LANES) * LANES)
    if D <= max_cols:
        return _round_up(D, LANES)
    t = max_cols
    lo = max(512, max_cols // 4)
    while t >= lo:
        if D % t == 0:
            return t
        t -= LANES
    return max_cols  # no nice divisor: wrapper zero-pads D up to a multiple


def _pick_tb(N, max_rows):
    """Largest multiple-of-8 divisor of N within the row budget.  When N >= 16
    keep at least two row blocks so the 'parallel' grid axis can be sharded
    across both v7x TensorCores.  Falls back to tb = N (full first dim) if N
    has no multiple-of-8 divisor (the kernel then uses the unfused path)."""
    cap = max(8, min(max_rows, N))
    if N >= 16:
        cap = min(cap, N // 2)
    best = None
    d = 8
    while d <= cap:
        if N % d == 0:
            best = d
        d += 8
    if best is None:
        d = 8
        while d <= min(max_rows, N):
            if N % d == 0:
                best = d
            d += 8
    return best if best is not None else N


# ----------------------------------------------------------------------------
# Single fused kernel.
# Grid = (N // tb, D_pad // tk); the k axis (last) is the contraction axis.
#   inputs : x block (2, tb, tk)   -- both batch halves of the same row block
#            W       (D_pad, K) resident  OR  (tk, K) streamed (unpadded K)
#            b       (1, K) resident
#   output : loss    (1, 1, tb)    -- lane-dense row, written on the last k
#   scratch: acc     (2*tb, K) [fused] / (2, tb, K)   -- resident logits
#            sumsq   (tb, 1)                          -- running ||x1 - x2||^2
# ----------------------------------------------------------------------------
def _attack_loss_kernel(x_ref, w_ref, b_ref, loss_ref, acc_ref, sumsq_ref,
                        *, tk, correction, fused, w_resident):
    k = pl.program_id(1)

    @pl.when(k == 0)
    def _():
        acc_ref[...] = jnp.zeros_like(acc_ref)
        sumsq_ref[...] = jnp.zeros_like(sumsq_ref)

    xs = x_ref[...]                          # (2, tb, tk) f32
    tb = xs.shape[1]

    if w_resident:
        start = pl.multiple_of(k * tk, tk)
        w = w_ref[pl.ds(start, tk), :]       # slice of the VMEM-resident W
    else:
        w = w_ref[...]                       # streamed (tk, K) block

    if fused:
        # tb % 8 == 0: merging the halves along sublanes is layout-free; one
        # dot amortizes the MXU RHS weight push over 2*tb rows.
        acc_ref[...] += jnp.dot(xs.reshape(2 * tb, tk), w,
                                preferred_element_type=jnp.float32)
    else:
        acc_ref[0] += jnp.dot(xs[0], w, preferred_element_type=jnp.float32)
        acc_ref[1] += jnp.dot(xs[1], w, preferred_element_type=jnp.float32)

    d = xs[0] - xs[1]
    sumsq_ref[...] += jnp.sum(d * d, axis=1, keepdims=True)

    @pl.when(k == pl.num_programs(1) - 1)
    def _():
        bias = b_ref[...]                    # (1, K)
        if fused:
            y1 = acc_ref[pl.ds(0, tb), :] + bias      # (tb, K)
            y2 = acc_ref[pl.ds(tb, tb), :] + bias
        else:
            y1 = acc_ref[0] + bias
            y2 = acc_ref[1] + bias

        num_classes = y1.shape[1]
        iota = lax.broadcasted_iota(jnp.int32, y1.shape, 1)
        m1 = jnp.max(y1, axis=1, keepdims=True)                   # top logit
        # first-occurrence argmax (matches torch.max tie-breaking)
        j = jnp.min(jnp.where(y1 == m1, iota, num_classes),
                    axis=1, keepdims=True)
        y2_j = jnp.sum(jnp.where(iota == j, y2, 0.0), axis=1, keepdims=True)

        margin1 = m1 - y1
        margin2 = y2_j - y2
        # per-row scale; exact sqrt/divide keeps the 1e-4 check (dist == 0
        # yields inf/nan exactly like the reference would).
        scale = correction / jnp.sqrt(sumsq_ref[...])             # (tb, 1)
        L = jnp.abs(margin1 - margin2) * scale                    # (tb, K)
        loss_ref[...] = (-jnp.max(L, axis=1)).reshape(1, 1, tb)   # lane-dense


def attack_loss_pallas(x_nchw, data_mean, data_std, W, b,
                       *, input_norm_correction=1.0):
    B, C, H, Wd = x_nchw.shape
    assert B % 2 == 0, "pairwise loss needs an even batch"
    N = B // 2
    D = C * H * Wd
    K = W.shape[1]
    K_lanes = _round_up(K, LANES)            # lane-padded VMEM width of classes

    # ---- VMEM-budget-driven tiling ------------------------------------------
    try:
        vmem_cap = int(pltpu.get_tpu_info().vmem_capacity_bytes)
    except Exception:
        vmem_cap = 64 * 1024 * 1024          # conservative: v7x physical VMEM
    vmem_limit = max(32 * 1024 * 1024,
                     min((vmem_cap * 3) // 4, 96 * 1024 * 1024))

    tk_cap = 4096 if vmem_limit >= 64 * 1024 * 1024 else 2048
    tk = _pick_tk(D, tk_cap)
    D_pad = _round_up(D, tk)
    nk = D_pad // tk

    # W resident in VMEM if its lane-padded (worst case double-buffered)
    # footprint is small; otherwise stream unpadded (tk, K) blocks per k step.
    w_resident = 2 * D_pad * K_lanes * 4 <= vmem_limit // 3
    w_vmem = 2 * D_pad * K_lanes * 4 if w_resident else 2 * tk * K_lanes * 4

    slack = 4 * 1024 * 1024                  # acc/bias/loss/sumsq + headroom
    budget_x = max(vmem_limit - w_vmem - slack, 4 * 1024 * 1024)
    max_rows = max(8, min(512, (budget_x // (16 * tk)) // 8 * 8))
    tb = _pick_tb(N, max_rows)
    assert N % tb == 0
    n_row_blocks = N // tb
    fused = (tb % 8 == 0)

    # ---- trace-time glue (fold normalization, pad feature dim) --------------
    x_flat = x_nchw.reshape(B, D).astype(jnp.float32)
    mean_flat = jnp.broadcast_to(
        data_mean[:, None, None].astype(jnp.float32), (C, H, Wd)).reshape(D)
    std_flat = jnp.broadcast_to(
        data_std[:, None, None].astype(jnp.float32), (C, H, Wd)).reshape(D)
    inv_std = 1.0 / std_flat
    W_f = W.astype(jnp.float32)
    # fold normalization:  ((x-mean)/std) @ W + b == x @ (W/std) + (b - (mean/std)@W)
    W_fold = W_f * inv_std[:, None]                                 # (D, K)
    b_fold = b.astype(jnp.float32) - (mean_flat * inv_std) @ W_f

    pad = D_pad - D
    if pad:
        # zero feature padding: contributes 0 to both the matmul and ||x1-x2||
        x_flat = jnp.pad(x_flat, ((0, 0), (0, pad)))
        W_fold = jnp.pad(W_fold, ((0, pad), (0, 0)))
    x3 = x_flat.reshape(2, N, D_pad)                                # two halves
    b2 = b_fold.reshape(1, K)

    if w_resident:
        w_spec = pl.BlockSpec((D_pad, K), lambda i, k: (0, 0))      # fetched once
    else:
        w_spec = pl.BlockSpec((tk, K), lambda i, k: (k, 0))         # streamed

    acc_shape = (2 * tb, K) if fused else (2, tb, K)

    kernel = functools.partial(
        _attack_loss_kernel, tk=tk, correction=float(input_norm_correction),
        fused=fused, w_resident=w_resident)

    loss = pl.pallas_call(
        kernel,
        out_shape=jax.ShapeDtypeStruct((n_row_blocks, 1, tb), jnp.float32),
        grid_spec=pltpu.PrefetchScalarGridSpec(
            num_scalar_prefetch=0,
            grid=(n_row_blocks, nk),
            in_specs=[
                pl.BlockSpec((2, tb, tk), lambda i, k: (0, i, k)),
                w_spec,
                pl.BlockSpec((1, K), lambda i, k: (0, 0)),
            ],
            out_specs=pl.BlockSpec((1, 1, tb), lambda i, k: (i, 0, 0)),
            scratch_shapes=[
                pltpu.VMEM(acc_shape, jnp.float32),   # resident logits acc
                pltpu.VMEM((tb, 1), jnp.float32),     # running ||x1-x2||^2
            ],
        ),
        compiler_params=pltpu.CompilerParams(
            dimension_semantics=("parallel", "arbitrary"),
            vmem_limit_bytes=int(vmem_limit),
        ),
    )(x3, W_fold, b2)
    return loss.reshape(N)


# ----------------------------------------------------------------------------
# Pure-JAX reference (mirrors the PyTorch math exactly) for validation.
# ----------------------------------------------------------------------------
def attack_loss_ref(x_nchw, data_mean, data_std, W, b, *, input_norm_correction=1.0):
    B = x_nchw.shape[0]
    N = B // 2
    xn = (x_nchw - data_mean[None, :, None, None]) / data_std[None, :, None, None]
    logits = xn.reshape(B, -1) @ W + b
    pred_vals = logits.max(axis=1)
    preds = logits.argmax(axis=1)
    X1, X2 = x_nchw[:N], x_nchw[N:]
    y1, y2 = logits[:N], logits[N:]
    j = preds[:N]
    y1_j = pred_vals[:N]
    y2_j = jnp.take_along_axis(y2, j[:, None], axis=1)
    margin1 = y1_j[:, None] - y1
    margin2 = y2_j - y2
    dist = jnp.sqrt(jnp.sum((X1 - X2).reshape(N, -1) ** 2, axis=1))
    L = jnp.abs(margin1 - margin2) / dist[:, None] * input_norm_correction
    return -L.max(axis=1)


if __name__ == "__main__":
    key = jax.random.PRNGKey(0)
    B, C, H, Wd = 16, 4, 16, 16          # NCHW images, batch split into pairs
    K = 10                               # num classes (kept unpadded end-to-end)
    D = C * H * Wd
    n_batches = 2
    input_norm_correction = 1.0

    k1, k2, k3 = jax.random.split(key, 3)
    # deterministic synthetic "dataset": images in [0, 1]
    all_inputs = jax.random.uniform(k1, (n_batches * B, C, H, Wd), jnp.float32)
    # deterministic synthetic linear model parameters
    W = jax.random.normal(k2, (D, K), jnp.float32) * 0.05
    b = jax.random.normal(k3, (K,), jnp.float32) * 0.1
    data_mean = jnp.array([0.4914, 0.4822, 0.4465, 0.5], jnp.float32)[:C]
    data_std = jnp.array([0.2470, 0.2435, 0.2616, 0.25], jnp.float32)[:C]

    # TODO(synk): the PyTorch forward() runs max_iter PGD gradient steps with a
    # torch optimizer / autograd plus dataset iteration, CSV and image dumping;
    # that driver is not expressible as a Pallas kernel — only the per-batch
    # forward / loss / max tracking is mirrored here.
    max_loss = None
    for start in range(0, n_batches * B, B):
        inputs = all_inputs[start:start + B]
        loss = attack_loss_pallas(inputs, data_mean, data_std, W, b,
                                  input_norm_correction=input_norm_correction)
        loss_ref = attack_loss_ref(inputs, data_mean, data_std, W, b,
                                   input_norm_correction=input_norm_correction)
        loss = jax.block_until_ready(loss)
        assert jnp.allclose(loss, loss_ref, rtol=1e-4, atol=1e-4), (loss, loss_ref)
        cur_max = (-loss).max()
        max_loss = cur_max if max_loss is None else jnp.maximum(max_loss, cur_max)

    jax.block_until_ready(max_loss)
    print("KERNEL_OK")
</pallas_src>

<mosaic_0001>
module attributes {stable_mosaic.version = 11 : i64} {
  func.func @_attack_loss_kernel(%arg0: i32, %arg1: i32, %arg2: memref<2x8x1024xf32, #tpu.memory_space<vmem>>, %arg3: memref<1024x10xf32, #tpu.memory_space<vmem>>, %arg4: memref<1x10xf32, #tpu.memory_space<vmem>>, %arg5: memref<1x1x8xf32, #tpu.memory_space<vmem>>, %arg6: memref<16x10xf32, #tpu.memory_space<vmem>>, %arg7: memref<8x1xf32, #tpu.memory_space<vmem>>) attributes {dimension_semantics = [#tpu.dimension_semantics<parallel>, #tpu.dimension_semantics<arbitrary>], iteration_bounds = array<i64: 1, 1>, scalar_prefetch = 0 : i64, scratch_operands = 2 : i64, tpu.core_type = #tpu.core_type<tc>, window_params = [{transform_indices = @transform_0, window_bounds = array<i64: 2, 8, 1024>}, {pipeline_mode = #tpu.pipeline_mode<synchronous>, transform_indices = @transform_1, window_bounds = array<i64: 1024, 10>}, {pipeline_mode = #tpu.pipeline_mode<synchronous>, transform_indices = @transform_2, window_bounds = array<i64: 1, 10>}, {transform_indices = @transform_3, window_bounds = array<i64: 1, 1, 8>}]} {
    %c0_i32 = arith.constant 0 : i32
    %0 = arith.cmpi eq, %arg1, %c0_i32 : i32
    %1 = arith.extui %0 : i1 to i32
    %c0_i32_0 = arith.constant 0 : i32
    %2 = arith.cmpi ne, %1, %c0_i32_0 : i32
    scf.if %2 {
      %cst_15 = arith.constant 0.000000e+00 : f32
      %27 = vector.broadcast %cst_15 : f32 to vector<16x10xf32>
      %c0_16 = arith.constant 0 : index
      %c0_17 = arith.constant 0 : index
      %28 = vector.load %arg6[%c0_16, %c0_17] : memref<16x10xf32, #tpu.memory_space<vmem>>, vector<16x10xf32>
      tpu.vector_store %arg6[%c0_16, %c0_17], %27 {strides = array<i32>} : memref<16x10xf32, #tpu.memory_space<vmem>>, vector<16x10xf32>,
      %cst_18 = arith.constant 0.000000e+00 : f32
      %29 = vector.broadcast %cst_18 : f32 to vector<8x1xf32>
      %c0_19 = arith.constant 0 : index
      %c0_20 = arith.constant 0 : index
      %30 = vector.load %arg7[%c0_19, %c0_20] : memref<8x1xf32, #tpu.memory_space<vmem>>, vector<8x1xf32>
      tpu.vector_store %arg7[%c0_19, %c0_20], %29 {strides = array<i32>} : memref<8x1xf32, #tpu.memory_space<vmem>>, vector<8x1xf32>,
    } else {
    }
    %c0 = arith.constant 0 : index
    %c0_1 = arith.constant 0 : index
    %c0_2 = arith.constant 0 : index
    %3 = vector.load %arg2[%c0, %c0_1, %c0_2] : memref<2x8x1024xf32, #tpu.memory_space<vmem>>, vector<2x8x1024xf32>
    %c1024_i32 = arith.constant 1024 : i32
    %4 = arith.muli %arg1, %c1024_i32 : i32
    %5 = tpu.assume_multiple %4, 1024 : i32
    %6 = arith.index_cast %5 : i32 to index
    %c0_3 = arith.constant 0 : index
    %7 = vector.load %arg3[%6, %c0_3] : memref<1024x10xf32, #tpu.memory_space<vmem>>, vector<1024x10xf32>
    %c0_4 = arith.constant 0 : index
    %c0_5 = arith.constant 0 : index
    %8 = vector.load %arg6[%c0_4, %c0_5] : memref<16x10xf32, #tpu.memory_space<vmem>>, vector<16x10xf32>
    %9 = vector.shape_cast %3 : vector<2x8x1024xf32> to vector<16x1024xf32>
    %cst = arith.constant dense<0.000000e+00> : vector<16x10xf32>
    %10 = tpu.matmul %9, %7, %cst {dimension_numbers = #tpu.dot_dimension_numbers<[1], [0], [0], [1], [0, 0, 1, 1], [], []>} : vector<16x1024xf32>, vector<1024x10xf32>, vector<16x10xf32> -> vector<16x10xf32>
    %11 = arith.addf %8, %10 : vector<16x10xf32>
    %c0_6 = arith.constant 0 : index
    %c0_7 = arith.constant 0 : index
    %12 = vector.load %arg6[%c0_6, %c0_7] : memref<16x10xf32, #tpu.memory_space<vmem>>, vector<16x10xf32>
    tpu.vector_store %arg6[%c0_6, %c0_7], %11 {strides = array<i32>} : memref<16x10xf32, #tpu.memory_space<vmem>>, vector<16x10xf32>,
    %13 = vector.extract_strided_slice %3 {offsets = [0, 0, 0], sizes = [1, 8, 1024], strides = [1, 1, 1]} : vector<2x8x1024xf32> to vector<1x8x1024xf32>
    %14 = vector.shape_cast %13 : vector<1x8x1024xf32> to vector<8x1024xf32>
    %15 = vector.extract_strided_slice %3 {offsets = [1, 0, 0], sizes = [1, 8, 1024], strides = [1, 1, 1]} : vector<2x8x1024xf32> to vector<1x8x1024xf32>
    %16 = vector.shape_cast %15 : vector<1x8x1024xf32> to vector<8x1024xf32>
    %17 = arith.subf %14, %16 : vector<8x1024xf32>
    %c0_8 = arith.constant 0 : index
    %c0_9 = arith.constant 0 : index
    %18 = vector.load %arg7[%c0_8, %c0_9] : memref<8x1xf32, #tpu.memory_space<vmem>>, vector<8x1xf32>
    %19 = arith.mulf %17, %17 : vector<8x1024xf32>
    %cst_10 = arith.constant dense<0.000000e+00> : vector<8xf32>
    %20 = vector.multi_reduction <add>, %19, %cst_10 [1] : vector<8x1024xf32> to vector<8xf32>
    %21 = vector.shape_cast %20 : vector<8xf32> to vector<8x1xf32>
    %22 = arith.addf %18, %21 : vector<8x1xf32>
    %c0_11 = arith.constant 0 : index
    %c0_12 = arith.constant 0 : index
    %23 = vector.load %arg7[%c0_11, %c0_12] : memref<8x1xf32, #tpu.memory_space<vmem>>, vector<8x1xf32>
    tpu.vector_store %arg7[%c0_11, %c0_12], %22 {strides = array<i32>} : memref<8x1xf32, #tpu.memory_space<vmem>>, vector<8x1xf32>,
    %c0_i32_13 = arith.constant 0 : i32
    %24 = arith.cmpi eq, %arg1, %c0_i32_13 : i32
    %25 = arith.extui %24 : i1 to i32
    %c0_i32_14 = arith.constant 0 : i32
    %26 = arith.cmpi ne, %25, %c0_i32_14 : i32
    scf.if %26 {
      %c0_15 = arith.constant 0 : index
      %c0_16 = arith.constant 0 : index
      %27 = vector.load %arg4[%c0_15, %c0_16] : memref<1x10xf32, #tpu.memory_space<vmem>>, vector<1x10xf32>
      %c0_17 = arith.constant 0 : index
      %c0_18 = arith.constant 0 : index
      %28 = vector.load %arg6[%c0_17, %c0_18] : memref<16x10xf32, #tpu.memory_space<vmem>>, vector<8x10xf32>
      %29 = vector.broadcast %27 : vector<1x10xf32> to vector<8x10xf32>
      %30 = arith.addf %28, %29 : vector<8x10xf32>
      %c8 = arith.constant 8 : index
      %c0_19 = arith.constant 0 : index
      %31 = vector.load %arg6[%c8, %c0_19] : memref<16x10xf32, #tpu.memory_space<vmem>>, vector<8x10xf32>
      %32 = vector.broadcast %27 : vector<1x10xf32> to vector<8x10xf32>
      %33 = arith.addf %31, %32 : vector<8x10xf32>
      %34 = tpu.iota {dimensions = array<i32: 1>} : vector<8x10xi32>
      %cst_20 = arith.constant dense<0xFF800000> : vector<8xf32>
      %35 = vector.multi_reduction <maximumf>, %30, %cst_20 [1] : vector<8x10xf32> to vector<8xf32>
      %36 = vector.shape_cast %35 : vector<8xf32> to vector<8x1xf32>
      %37 = vector.broadcast %36 : vector<8x1xf32> to vector<8x10xf32>
      %38 = arith.cmpf oeq, %30, %37 : vector<8x10xf32>
      %c10_i32 = arith.constant 10 : i32
      %39 = vector.broadcast %c10_i32 : i32 to vector<8x10xi32>
      %40 = arith.select %38, %34, %39 : vector<8x10xi1>, vector<8x10xi32>
      %cst_21 = arith.constant dense<2147483647> : vector<8xi32>
      %41 = vector.multi_reduction <minsi>, %40, %cst_21 [1] : vector<8x10xi32> to vector<8xi32>
      %42 = vector.shape_cast %41 : vector<8xi32> to vector<8x1xi32>
      %43 = vector.broadcast %42 : vector<8x1xi32> to vector<8x10xi32>
      %44 = arith.cmpi eq, %34, %43 : vector<8x10xi32>
      %cst_22 = arith.constant 0.000000e+00 : f32
      %45 = vector.broadcast %cst_22 : f32 to vector<8x10xf32>
      %46 = arith.select %44, %33, %45 : vector<8x10xi1>, vector<8x10xf32>
      %cst_23 = arith.constant dense<0.000000e+00> : vector<8xf32>
      %47 = vector.multi_reduction <add>, %46, %cst_23 [1] : vector<8x10xf32> to vector<8xf32>
      %48 = vector.shape_cast %47 : vector<8xf32> to vector<8x1xf32>
      %49 = vector.broadcast %36 : vector<8x1xf32> to vector<8x10xf32>
      %50 = arith.subf %49, %30 : vector<8x10xf32>
      %51 = vector.broadcast %48 : vector<8x1xf32> to vector<8x10xf32>
      %52 = arith.subf %51, %33 : vector<8x10xf32>
      %c0_24 = arith.constant 0 : index
      %c0_25 = arith.constant 0 : index
      %53 = vector.load %arg7[%c0_24, %c0_25] : memref<8x1xf32, #tpu.memory_space<vmem>>, vector<8x1xf32>
      %54 = math.sqrt %53 : vector<8x1xf32>
      %cst_26 = arith.constant 1.000000e+00 : f32
      %55 = vector.broadcast %cst_26 : f32 to vector<8x1xf32>
      %56 = arith.divf %55, %54 : vector<8x1xf32>
      %57 = arith.subf %50, %52 : vector<8x10xf32>
      %58 = math.absf %57 : vector<8x10xf32>
      %59 = vector.broadcast %56 : vector<8x1xf32> to vector<8x10xf32>
      %60 = arith.mulf %58, %59 : vector<8x10xf32>
      %cst_27 = arith.constant dense<0xFF800000> : vector<8xf32>
      %61 = vector.multi_reduction <maximumf>, %60, %cst_27 [1] : vector<8x10xf32> to vector<8xf32>
      %cst_28 = arith.constant 0.000000e+00 : f32
      %62 = vector.broadcast %cst_28 : f32 to vector<8xf32>
      %63 = arith.subf %62, %61 : vector<8xf32>
      %64 = vector.shape_cast %63 : vector<8xf32> to vector<1x1x8xf32>
      %c0_29 = arith.constant 0 : index
      %c0_30 = arith.constant 0 : index
      %c0_31 = arith.constant 0 : index
      %65 = vector.load %arg5[%c0_29, %c0_30, %c0_31] : memref<1x1x8xf32, #tpu.memory_space<vmem>>, vector<1x1x8xf32>
      tpu.vector_store %arg5[%c0_29, %c0_30, %c0_31], %64 {strides = array<i32>} : memref<1x1x8xf32, #tpu.memory_space<vmem>>, vector<1x1x8xf32>,
    } else {
    }
    return
  }
  func.func @transform_0(%arg0: i32, %arg1: i32) -> (i32, i32, i32) {
    %c0_i32 = arith.constant 0 : i32
    %c0_i32_0 = arith.constant 0 : i32
    return %c0_i32, %arg0, %arg1 : i32, i32, i32
  }
  func.func @transform_1(%arg0: i32, %arg1: i32) -> (i32, i32) {
    %c0_i32 = arith.constant 0 : i32
    %c0_i32_0 = arith.constant 0 : i32
    %c0_i32_1 = arith.constant 0 : i32
    return %c0_i32, %c0_i32_0 : i32, i32
  }
  func.func @transform_2(%arg0: i32, %arg1: i32) -> (i32, i32) {
    %c0_i32 = arith.constant 0 : i32
    %c0_i32_0 = arith.constant 0 : i32
    %c0_i32_1 = arith.constant 0 : i32
    return %c0_i32, %c0_i32_0 : i32, i32
  }
  func.func @transform_3(%arg0: i32, %arg1: i32) -> (i32, i32, i32) {
    %c0_i32 = arith.constant 0 : i32
    %c0_i32_0 = arith.constant 0 : i32
    %c0_i32_1 = arith.constant 0 : i32
    return %arg0, %c0_i32, %c0_i32_0 : i32, i32, i32
  }
}

</mosaic_0001>

<llo_original>
// kernel: tpu_custom_call.1
$region0: #{tpu_custom_call.1}
  #allocation0 [shape = 'u32[]', space=smem, size = 0x4, offset = 0x4, fixed_abs, tag = 'smem constant byte address 0x4 - core index']
  #allocation1 [shape = 'u32[144,128]{1,0:T(1,128)}', space=vmem, size = 0x12000, scoped, tag = 'internal scratch']
  #allocation2 [shape = 'f32[16,10]{1,0:T(8,128)}', space=vmem, size = 0x2000, scoped, tag = 'scratch operand']
  #allocation3 [shape = 'f32[8,1]{1,0:T(8,128)}', space=vmem, size = 0x1000, scoped, tag = 'scratch operand']
  %s0 = inlined_call_operand.vmem [shape: f32[2,8,1024], index: 0, kind: input, shape index: {}]
  %s1 = inlined_call_operand.vmem [shape: f32[1024,10], index: 1, kind: input, shape index: {}]
  %s2 = inlined_call_operand.vmem [shape: f32[1,10], index: 2, kind: input, shape index: {}]
  %s3 = inlined_call_operand.hbm [shape: f32[1,1,8], index: 3, kind: output, shape index: {}]
  %s4 = sld [smem:[#allocation0]]
  $region30: #{tpu_custom_call.1} parent=0
    _
  %s6 = ssub.s32 1, %s4
  %s7 = scalar_select 0, %s6, %s4
  $region1: #{tpu_custom_call.1} parent=0
    #allocation4 [shape = 'u8[512]{0}', space=vmem, size = 0x400, scoped, tag = 'output window, operand 0, single buffered']
    #allocation5 [shape = 's32[1]{0}', space=sflag, size = 0x4, scoped, tag = 'scoped memory for tpu_custom_call.1']
    %8 = vsyncpa [#allocation5], 0
    // Predicated region
    $region2: #{tpu_custom_call.1} parent=1 // pred_check
      _
    $region3: #{tpu_custom_call.1} parent=1 // pred_check_branch
      %10 = sbr.rel (0) target = $region5
    $region4: #{tpu_custom_call.1} parent=1 // pred_region
      _
    $region5: #{tpu_custom_call.1} parent=1 // pred_fallthru
      _
    // Predicated region
    $region6: #{tpu_custom_call.1} parent=1 // pred_check
      _
    $region7: #{tpu_custom_call.1} parent=1 // pred_check_branch
      %12 = sbr.rel (0) target = $region9
    $region8: #{tpu_custom_call.1} parent=1 // pred_region
      _
    $region9: #{tpu_custom_call.1} parent=1 // pred_fallthru
      _
    // Predicated region
    $region10: #{tpu_custom_call.1} parent=1 // pred_check
      _
    $region11: #{tpu_custom_call.1} parent=1 // pred_check_branch
      %14 = sbr.rel (0) target = $region13
    $region12: #{tpu_custom_call.1} parent=1 // pred_region
      _
    $region13: #{tpu_custom_call.1} parent=1 // pred_fallthru
      _
    %p15 = scmp.eq.s32.totalorder 0, 0
    // Predicated region
    $region14: #{tpu_custom_call.1} parent=1 // pred_check
      %p16 = pneg %p15
    $region15: #{tpu_custom_call.1} parent=1 // pred_check_branch
      %18 = sbr.rel (%p16) target = $region17
    $region16: #{tpu_custom_call.1} parent=1 // pred_region
      %vm19 = vcmask 80896
      %20 = vst.msk [vmem:[#allocation2] sm:$0xff] %vm19, 0.0
      %21 = vst.msk [vmem:[#allocation2 + $0x8] sm:$0xff] %vm19, 0.0
      %vm22 = vcmask 7168
      %23 = vst.msk [vmem:[#allocation3] sm:$0xff] %vm22, 0.0
    $region17: #{tpu_custom_call.1} parent=1 // pred_fallthru
      _
    %v24 = vld [vmem:[%s0] sm:$0xff]
    %v25 = vld [vmem:[%s0 + $0x8] sm:$0xff]
    %v26 = vld [vmem:[%s0 + $0x10] sm:$0xff]
    %v27 = vld [vmem:[%s0 + $0x18] sm:$0xff]
    %v28 = vld [vmem:[%s0 + $0x20] sm:$0xff]
    %v29 = vld [vmem:[%s0 + $0x28] sm:$0xff]
    %v30 = vld [vmem:[%s0 + $0x30] sm:$0xff]
    %v31 = vld [vmem:[%s0 + $0x38] sm:$0xff]
    %v32 = vld [vmem:[%s0 + $0x40] sm:$0xff]
    %v33 = vld [vmem:[%s0 + $0x48] sm:$0xff]
    %v34 = vld [vmem:[%s0 + $0x50] sm:$0xff]
    %v35 = vld [vmem:[%s0 + $0x58] sm:$0xff]
    %v36 = vld [vmem:[%s0 + $0x60] sm:$0xff]
    %v37 = vld [vmem:[%s0 + $0x68] sm:$0xff]
    %v38 = vld [vmem:[%s0 + $0x70] sm:$0xff]
    %v39 = vld [vmem:[%s0 + $0x78] sm:$0xff]
    %s40 = smul.u32 0, 1024
    %s41 = scalar_lea.vmem %s1, %s40
    %v42 = vld [vmem:[%s41] sm:$0xff]
    %v43 = vld [vmem:[%s41 + $0x8] sm:$0xff]
    %v44 = vld [vmem:[%s41 + $0x10] sm:$0xff]
    %v45 = vld [vmem:[%s41 + $0x18] sm:$0xff]
    %v46 = vld [vmem:[%s41 + $0x20] sm:$0xff]
    %v47 = vld [vmem:[%s41 + $0x28] sm:$0xff]
    %v48 = vld [vmem:[%s41 + $0x30] sm:$0xff]
    %v49 = vld [vmem:[%s41 + $0x38] sm:$0xff]
    %v50 = vld [vmem:[%s41 + $0x40] sm:$0xff]
    %v51 = vld [vmem:[%s41 + $0x48] sm:$0xff]
    %v52 = vld [vmem:[%s41 + $0x50] sm:$0xff]
    %v53 = vld [vmem:[%s41 + $0x58] sm:$0xff]
    %v54 = vld [vmem:[%s41 + $0x60] sm:$0xff]
    %v55 = vld [vmem:[%s41 + $0x68] sm:$0xff]
    %v56 = vld [vmem:[%s41 + $0x70] sm:$0xff]
    %v57 = vld [vmem:[%s41 + $0x78] sm:$0xff]
    %v58 = vld [vmem:[%s41 + $0x80] sm:$0xff]
    %v59 = vld [vmem:[%s41 + $0x88] sm:$0xff]
    %v60 = vld [vmem:[%s41 + $0x90] sm:$0xff]
    %v61 = vld [vmem:[%s41 + $0x98] sm:$0xff]
    %v62 = vld [vmem:[%s41 + $0xa0] sm:$0xff]
    %v63 = vld [vmem:[%s41 + $0xa8] sm:$0xff]
    %v64 = vld [vmem:[%s41 + $0xb0] sm:$0xff]
    %v65 = vld [vmem:[%s41 + $0xb8] sm:$0xff]
    %v66 = vld [vmem:[%s41 + $0xc0] sm:$0xff]
    %v67 = vld [vmem:[%s41 + $0xc8] sm:$0xff]
    %v68 = vld [vmem:[%s41 + $0xd0] sm:$0xff]
    %v69 = vld [vmem:[%s41 + $0xd8] sm:$0xff]
    %v70 = vld [vmem:[%s41 + $0xe0] sm:$0xff]
    %v71 = vld [vmem:[%s41 + $0xe8] sm:$0xff]
    %v72 = vld [vmem:[%s41 + $0xf0] sm:$0xff]
    %v73 = vld [vmem:[%s41 + $0xf8] sm:$0xff]
    %v74 = vld [vmem:[%s41 + $0x100] sm:$0xff]
    %v75 = vld [vmem:[%s41 + $0x108] sm:$0xff]
    %v76 = vld [vmem:[%s41 + $0x110] sm:$0xff]
    %v77 = vld [vmem:[%s41 + $0x118] sm:$0xff]
    %v78 = vld [vmem:[%s41 + $0x120] sm:$0xff]
    %v79 = vld [vmem:[%s41 + $0x128] sm:$0xff]
    %v80 = vld [vmem:[%s41 + $0x130] sm:$0xff]
    %v81 = vld [vmem:[%s41 + $0x138] sm:$0xff]
    %v82 = vld [vmem:[%s41 + $0x140] sm:$0xff]
    %v83 = vld [vmem:[%s41 + $0x148] sm:$0xff]
    %v84 = vld [vmem:[%s41 + $0x150] sm:$0xff]
    %v85 = vld [vmem:[%s41 + $0x158] sm:$0xff]
    %v86 = vld [vmem:[%s41 + $0x160] sm:$0xff]
    %v87 = vld [vmem:[%s41 + $0x168] sm:$0xff]
    %v88 = vld [vmem:[%s41 + $0x170] sm:$0xff]
    %v89 = vld [vmem:[%s41 + $0x178] sm:$0xff]
    %v90 = vld [vmem:[%s41 + $0x180] sm:$0xff]
    %v91 = vld [vmem:[%s41 + $0x188] sm:$0xff]
    %v92 = vld [vmem:[%s41 + $0x190] sm:$0xff]
    %v93 = vld [vmem:[%s41 + $0x198] sm:$0xff]
    %v94 = vld [vmem:[%s41 + $0x1a0] sm:$0xff]
    %v95 = vld [vmem:[%s41 + $0x1a8] sm:$0xff]
    %v96 = vld [vmem:[%s41 + $0x1b0] sm:$0xff]
    %v97 = vld [vmem:[%s41 + $0x1b8] sm:$0xff]
    %v98 = vld [vmem:[%s41 + $0x1c0] sm:$0xff]
    %v99 = vld [vmem:[%s41 + $0x1c8] sm:$0xff]
    %v100 = vld [vmem:[%s41 + $0x1d0] sm:$0xff]
    %v101 = vld [vmem:[%s41 + $0x1d8] sm:$0xff]
    %v102 = vld [vmem:[%s41 + $0x1e0] sm:$0xff]
    %v103 = vld [vmem:[%s41 + $0x1e8] sm:$0xff]
    %v104 = vld [vmem:[%s41 + $0x1f0] sm:$0xff]
    %v105 = vld [vmem:[%s41 + $0x1f8] sm:$0xff]
    %v106 = vld [vmem:[%s41 + $0x200] sm:$0xff]
    %v107 = vld [vmem:[%s41 + $0x208] sm:$0xff]
    %v108 = vld [vmem:[%s41 + $0x210] sm:$0xff]
    %v109 = vld [vmem:[%s41 + $0x218] sm:$0xff]
    %v110 = vld [vmem:[%s41 + $0x220] sm:$0xff]
    %v111 = vld [vmem:[%s41 + $0x228] sm:$0xff]
    %v112 = vld [vmem:[%s41 + $0x230] sm:$0xff]
    %v113 = vld [vmem:[%s41 + $0x238] sm:$0xff]
    %v114 = vld [vmem:[%s41 + $0x240] sm:$0xff]
    %v115 = vld [vmem:[%s41 + $0x248] sm:$0xff]
    %v116 = vld [vmem:[%s41 + $0x250] sm:$0xff]
    %v117 = vld [vmem:[%s41 + $0x258] sm:$0xff]
    %v118 = vld [vmem:[%s41 + $0x260] sm:$0xff]
    %v119 = vld [vmem:[%s41 + $0x268] sm:$0xff]
    %v120 = vld [vmem:[%s41 + $0x270] sm:$0xff]
    %v121 = vld [vmem:[%s41 + $0x278] sm:$0xff]
    %v122 = vld [vmem:[%s41 + $0x280] sm:$0xff]
    %v123 = vld [vmem:[%s41 + $0x288] sm:$0xff]
    %v124 = vld [vmem:[%s41 + $0x290] sm:$0xff]
    %v125 = vld [vmem:[%s41 + $0x298] sm:$0xff]
    %v126 = vld [vmem:[%s41 + $0x2a0] sm:$0xff]
    %v127 = vld [vmem:[%s41 + $0x2a8] sm:$0xff]
    %v128 = vld [vmem:[%s41 + $0x2b0] sm:$0xff]
    %v129 = vld [vmem:[%s41 + $0x2b8] sm:$0xff]
    %v130 = vld [vmem:[%s41 + $0x2c0] sm:$0xff]
    %v131 = vld [vmem:[%s41 + $0x2c8] sm:$0xff]
    %v132 = vld [vmem:[%s41 + $0x2d0] sm:$0xff]
    %v133 = vld [vmem:[%s41 + $0x2d8] sm:$0xff]
    %v134 = vld [vmem:[%s41 + $0x2e0] sm:$0xff]
    %v135 = vld [vmem:[%s41 + $0x2e8] sm:$0xff]
    %v136 = vld [vmem:[%s41 + $0x2f0] sm:$0xff]
    %v137 = vld [vmem:[%s41 + $0x2f8] sm:$0xff]
    %v138 = vld [vmem:[%s41 + $0x300] sm:$0xff]
    %v139 = vld [vmem:[%s41 + $0x308] sm:$0xff]
    %v140 = vld [vmem:[%s41 + $0x310] sm:$0xff]
    %v141 = vld [vmem:[%s41 + $0x318] sm:$0xff]
    %v142 = vld [vmem:[%s41 + $0x320] sm:$0xff]
    %v143 = vld [vmem:[%s41 + $0x328] sm:$0xff]
    %v144 = vld [vmem:[%s41 + $0x330] sm:$0xff]
    %v145 = vld [vmem:[%s41 + $0x338] sm:$0xff]
    %v146 = vld [vmem:[%s41 + $0x340] sm:$0xff]
    %v147 = vld [vmem:[%s41 + $0x348] sm:$0xff]
    %v148 = vld [vmem:[%s41 + $0x350] sm:$0xff]
    %v149 = vld [vmem:[%s41 + $0x358] sm:$0xff]
    %v150 = vld [vmem:[%s41 + $0x360] sm:$0xff]
    %v151 = vld [vmem:[%s41 + $0x368] sm:$0xff]
    %v152 = vld [vmem:[%s41 + $0x370] sm:$0xff]
    %v153 = vld [vmem:[%s41 + $0x378] sm:$0xff]
    %v154 = vld [vmem:[%s41 + $0x380] sm:$0xff]
    %v155 = vld [vmem:[%s41 + $0x388] sm:$0xff]
    %v156 = vld [vmem:[%s41 + $0x390] sm:$0xff]
    %v157 = vld [vmem:[%s41 + $0x398] sm:$0xff]
    %v158 = vld [vmem:[%s41 + $0x3a0] sm:$0xff]
    %v159 = vld [vmem:[%s41 + $0x3a8] sm:$0xff]
    %v160 = vld [vmem:[%s41 + $0x3b0] sm:$0xff]
    %v161 = vld [vmem:[%s41 + $0x3b8] sm:$0xff]
    %v162 = vld [vmem:[%s41 + $0x3c0] sm:$0xff]
    %v163 = vld [vmem:[%s41 + $0x3c8] sm:$0xff]
    %v164 = vld [vmem:[%s41 + $0x3d0] sm:$0xff]
    %v165 = vld [vmem:[%s41 + $0x3d8] sm:$0xff]
    %v166 = vld [vmem:[%s41 + $0x3e0] sm:$0xff]
    %v167 = vld [vmem:[%s41 + $0x3e8] sm:$0xff]
    %v168 = vld [vmem:[%s41 + $0x3f0] sm:$0xff]
    %v169 = vld [vmem:[%s41 + $0x3f8] sm:$0xff]
    %v170 = vld [vmem:[#allocation2] sm:$0xff]
    %v171 = vld [vmem:[#allocation2 + $0x8] sm:$0xff]
    %172 = vmatprep.subr.mxu0 0.0
    %173 = vmatpush1.msra.mxu0 %v42
    %174 = vmatprep.subr.mxu0 0.0
    %175 = vmatpush1.msra.mxu0 %v43
    %176 = vmatprep.subr.mxu0 0.0
    %177 = vmatpush1.msra.mxu0 %v44
    %178 = vmatprep.subr.mxu0 0.0
    %179 = vmatpush1.msra.mxu0 %v45
    %180 = vmatprep.subr.mxu0 0.0
    %181 = vmatpush1.msra.mxu0 %v46
    %182 = vmatprep.subr.mxu0 0.0
    %183 = vmatpush1.msra.mxu0 %v47
    %184 = vmatprep.subr.mxu0 0.0
    %185 = vmatpush1.msra.mxu0 %v48
    %186 = vmatprep.subr.mxu0 0.0
    %187 = vmatpush1.msra.mxu0 %v49
    %188 = vmatprep.subr.mxu0 0.0
    %189 = vmatpush1.msra.mxu0 %v50
    %190 = vmatprep.subr.mxu0 0.0
    %191 = vmatpush1.msra.mxu0 %v51
    %192 = vmatprep.subr.mxu0 0.0
    %193 = vmatpush1.msra.mxu0 %v52
    %194 = vmatprep.subr.mxu0 0.0
    %195 = vmatpush1.msra.mxu0 %v53
    %196 = vmatprep.subr.mxu0 0.0
    %197 = vmatpush1.msra.mxu0 %v54
    %198 = vmatprep.subr.mxu0 0.0
    %199 = vmatpush1.msra.mxu0 %v55
    %200 = vmatprep.subr.mxu0 0.0
    %201 = vmatpush1.msra.mxu0 %v56
    %202 = vmatprep.subr.mxu0 0.0
    %203 = vmatpush1.msra.mxu0 %v57
    %204 = vmatprep.subr.mxu0 0.0
    %205 = vmatpush1.msra.mxu0 %v58
    %206 = vmatprep.subr.mxu0 0.0
    %207 = vmatpush1.msra.mxu0 %v59
    %208 = vmatprep.subr.mxu0 0.0
    %209 = vmatpush1.msra.mxu0 %v60
    %210 = vmatprep.subr.mxu0 0.0
    %211 = vmatpush1.msra.mxu0 %v61
    %212 = vmatprep.subr.mxu0 0.0
    %213 = vmatpush1.msra.mxu0 %v62
    %214 = vmatprep.subr.mxu0 0.0
    %215 = vmatpush1.msra.mxu0 %v63
    %216 = vmatprep.subr.mxu0 0.0
    %217 = vmatpush1.msra.mxu0 %v64
    %218 = vmatprep.subr.mxu0 0.0
    %219 = vmatpush1.msra.mxu0 %v65
    %220 = vmatprep.subr.mxu0 0.0
    %221 = vmatpush1.msra.mxu0 %v66
    %222 = vmatprep.subr.mxu0 0.0
    %223 = vmatpush1.msra.mxu0 %v67
    %224 = vmatprep.subr.mxu0 0.0
    %225 = vmatpush1.msra.mxu0 %v68
    %226 = vmatprep.subr.mxu0 0.0
    %227 = vmatpush1.msra.mxu0 %v69
    %228 = vmatprep.subr.mxu0 0.0
    %229 = vmatpush1.msra.mxu0 %v70
    %230 = vmatprep.subr.mxu0 0.0
    %231 = vmatpush1.msra.mxu0 %v71
    %232 = vmatprep.subr.mxu0 0.0
    %233 = vmatpush1.msra.mxu0 %v72
    %234 = vmatprep.subr.mxu0 0.0
    %235 = vmatpush1.msra.mxu0 %v73
    %236 = vmatprep.mubr.f32.mxu0 %v25
    %237 = vmatmul.mubr.f32.gmra.mrb[0].mxu0 %v24
    %v238 = vpop.f32.mrb[0].mxu0
    %v239 = vadd.f32 0.0, %v238
    %v240 = vpop.f32.mrb[0].mxu0
    %241 = vmatprep.mubr.f32.mxu0 %v33
    %242 = vmatmul.mubr.f32.gmra.mrb[0].mxu0 %v32
    %v243 = vpop.f32.mrb[0].mxu0
    %v244 = vadd.f32 0.0, %v243
    %v245 = vpop.f32.mrb[0].mxu0
    %246 = vdwg.mxu0
    %247 = vmatprep.subr.mxu0 0.0
    %248 = vmatpush1.msra.mxu0 %v74
    %249 = vmatprep.subr.mxu0 0.0
    %250 = vmatpush1.msra.mxu0 %v75
    %251 = vmatprep.subr.mxu0 0.0
    %252 = vmatpush1.msra.mxu0 %v76
    %253 = vmatprep.subr.mxu0 0.0
    %254 = vmatpush1.msra.mxu0 %v77
    %255 = vmatprep.subr.mxu0 0.0
    %256 = vmatpush1.msra.mxu0 %v78
    %257 = vmatprep.subr.mxu0 0.0
    %258 = vmatpush1.msra.mxu0 %v79
    %259 = vmatprep.subr.mxu0 0.0
    %260 = vmatpush1.msra.mxu0 %v80
    %261 = vmatprep.subr.mxu0 0.0
    %262 = vmatpush1.msra.mxu0 %v81
    %263 = vmatprep.subr.mxu0 0.0
    %264 = vmatpush1.msra.mxu0 %v82
    %265 = vmatprep.subr.mxu0 0.0
    %266 = vmatpush1.msra.mxu0 %v83
    %267 = vmatprep.subr.mxu0 0.0
    %268 = vmatpush1.msra.mxu0 %v84
    %269 = vmatprep.subr.mxu0 0.0
    %270 = vmatpush1.msra.mxu0 %v85
    %271 = vmatprep.subr.mxu0 0.0
    %272 = vmatpush1.msra.mxu0 %v86
    %273 = vmatprep.subr.mxu0 0.0
    %274 = vmatpush1.msra.mxu0 %v87
    %275 = vmatprep.subr.mxu0 0.0
    %276 = vmatpush1.msra.mxu0 %v88
    %277 = vmatprep.subr.mxu0 0.0
    %278 = vmatpush1.msra.mxu0 %v89
    %279 = vmatprep.subr.mxu0 0.0
    %280 = vmatpush1.msra.mxu0 %v90
    %281 = vmatprep.subr.mxu0 0.0
    %282 = vmatpush1.msra.mxu0 %v91
    %283 = vmatprep.subr.mxu0 0.0
    %284 = vmatpush1.msra.mxu0 %v92
    %285 = vmatprep.subr.mxu0 0.0
    %286 = vmatpush1.msra.mxu0 %v93
    %287 = vmatprep.subr.mxu0 0.0
    %288 = vmatpush1.msra.mxu0 %v94
    %289 = vmatprep.subr.mxu0 0.0
    %290 = vmatpush1.msra.mxu0 %v95
    %291 = vmatprep.subr.mxu0 0.0
    %292 = vmatpush1.msra.mxu0 %v96
    %293 = vmatprep.subr.mxu0 0.0
    %294 = vmatpush1.msra.mxu0 %v97
    %295 = vmatprep.subr.mxu0 0.0
    %296 = vmatpush1.msra.mxu0 %v98
    %297 = vmatprep.subr.mxu0 0.0
    %298 = vmatpush1.msra.mxu0 %v99
    %299 = vmatprep.subr.mxu0 0.0
    %300 = vmatpush1.msra.mxu0 %v100
    %301 = vmatprep.subr.mxu0 0.0
    %302 = vmatpush1.msra.mxu0 %v101
    %303 = vmatprep.subr.mxu0 0.0
    %304 = vmatpush1.msra.mxu0 %v102
    %305 = vmatprep.subr.mxu0 0.0
    %306 = vmatpush1.msra.mxu0 %v103
    %307 = vmatprep.subr.mxu0 0.0
    %308 = vmatpush1.msra.mxu0 %v104
    %309 = vmatprep.subr.mxu0 0.0
    %310 = vmatpush1.msra.mxu0 %v105
    %311 = vmatprep.mubr.f32.mxu0 %v27
    %312 = vmatmul.mubr.f32.gmra.mrb[0].mxu0 %v26
    %v313 = vpop.f32.mrb[0].mxu0
    %v314 = vadd.f32 %v239, %v313
    %v315 = vpop.f32.mrb[0].mxu0
    %316 = vmatprep.mubr.f32.mxu0 %v35
    %317 = vmatmul.mubr.f32.gmra.mrb[0].mxu0 %v34
    %v318 = vpop.f32.mrb[0].mxu0
    %v319 = vadd.f32 %v244, %v318
    %v320 = vpop.f32.mrb[0].mxu0
    %321 = vdwg.mxu0
    %322 = vmatprep.subr.mxu0 0.0
    %323 = vmatpush1.msra.mxu0 %v106
    %324 = vmatprep.subr.mxu0 0.0
    %325 = vmatpush1.msra.mxu0 %v107
    %326 = vmatprep.subr.mxu0 0.0
    %327 = vmatpush1.msra.mxu0 %v108
    %328 = vmatprep.subr.mxu0 0.0
    %329 = vmatpush1.msra.mxu0 %v109
    %330 = vmatprep.subr.mxu0 0.0
    %331 = vmatpush1.msra.mxu0 %v110
    %332 = vmatprep.subr.mxu0 0.0
    %333 = vmatpush1.msra.mxu0 %v111
    %334 = vmatprep.subr.mxu0 0.0
    %335 = vmatpush1.msra.mxu0 %v112
    %336 = vmatprep.subr.mxu0 0.0
    %337 = vmatpush1.msra.mxu0 %v113
    %338 = vmatprep.subr.mxu0 0.0
    %339 = vmatpush1.msra.mxu0 %v114
    %340 = vmatprep.subr.mxu0 0.0
    %341 = vmatpush1.msra.mxu0 %v115
    %342 = vmatprep.subr.mxu0 0.0
    %343 = vmatpush1.msra.mxu0 %v116
    %344 = vmatprep.subr.mxu0 0.0
    %345 = vmatpush1.msra.mxu0 %v117
    %346 = vmatprep.subr.mxu0 0.0
    %347 = vmatpush1.msra.mxu0 %v118
    %348 = vmatprep.subr.mxu0 0.0
    %349 = vmatpush1.msra.mxu0 %v119
    %350 = vmatprep.subr.mxu0 0.0
    %351 = vmatpush1.msra.mxu0 %v120
    %352 = vmatprep.subr.mxu0 0.0
    %353 = vmatpush1.msra.mxu0 %v121
    %354 = vmatprep.subr.mxu0 0.0
    %355 = vmatpush1.msra.mxu0 %v122
    %356 = vmatprep.subr.mxu0 0.0
    %357 = vmatpush1.msra.mxu0 %v123
    %358 = vmatprep.subr.mxu0 0.0
    %359 = vmatpush1.msra.mxu0 %v124
    %360 = vmatprep.subr.mxu0 0.0
    %361 = vmatpush1.msra.mxu0 %v125
    %362 = vmatprep.subr.mxu0 0.0
    %363 = vmatpush1.msra.mxu0 %v126
    %364 = vmatprep.subr.mxu0 0.0
    %365 = vmatpush1.msra.mxu0 %v127
    %366 = vmatprep.subr.mxu0 0.0
    %367 = vmatpush1.msra.mxu0 %v128
    %368 = vmatprep.subr.mxu0 0.0
    %369 = vmatpush1.msra.mxu0 %v129
    %370 = vmatprep.subr.mxu0 0.0
    %371 = vmatpush1.msra.mxu0 %v130
    %372 = vmatprep.subr.mxu0 0.0
    %373 = vmatpush1.msra.mxu0 %v131
    %374 = vmatprep.subr.mxu0 0.0
    %375 = vmatpush1.msra.mxu0 %v132
    %376 = vmatprep.subr.mxu0 0.0
    %377 = vmatpush1.msra.mxu0 %v133
    %378 = vmatprep.subr.mxu0 0.0
    %379 = vmatpush1.msra.mxu0 %v134
    %380 = vmatprep.subr.mxu0 0.0
    %381 = vmatpush1.msra.mxu0 %v135
    %382 = vmatprep.subr.mxu0 0.0
    %383 = vmatpush1.msra.mxu0 %v136
    %384 = vmatprep.subr.mxu0 0.0
    %385 = vmatpush1.msra.mxu0 %v137
    %386 = vmatprep.mubr.f32.mxu0 %v29
    %387 = vmatmul.mubr.f32.gmra.mrb[0].mxu0 %v28
    %v388 = vpop.f32.mrb[0].mxu0
    %v389 = vadd.f32 %v314, %v388
    %v390 = vpop.f32.mrb[0].mxu0
    %391 = vmatprep.mubr.f32.mxu0 %v37
    %392 = vmatmul.mubr.f32.gmra.mrb[0].mxu0 %v36
    %v393 = vpop.f32.mrb[0].mxu0
    %v394 = vadd.f32 %v319, %v393
    %v395 = vpop.f32.mrb[0].mxu0
    %396 = vdwg.mxu0
    %397 = vmatprep.subr.mxu0 0.0
    %398 = vmatpush1.msra.mxu0 %v138
    %399 = vmatprep.subr.mxu0 0.0
    %400 = vmatpush1.msra.mxu0 %v139
    %401 = vmatprep.subr.mxu0 0.0
    %402 = vmatpush1.msra.mxu0 %v140
    %403 = vmatprep.subr.mxu0 0.0
    %404 = vmatpush1.msra.mxu0 %v141
    %405 = vmatprep.subr.mxu0 0.0
    %406 = vmatpush1.msra.mxu0 %v142
    %407 = vmatprep.subr.mxu0 0.0
    %408 = vmatpush1.msra.mxu0 %v143
    %409 = vmatprep.subr.mxu0 0.0
    %410 = vmatpush1.msra.mxu0 %v144
    %411 = vmatprep.subr.mxu0 0.0
    %412 = vmatpush1.msra.mxu0 %v145
    %413 = vmatprep.subr.mxu0 0.0
    %414 = vmatpush1.msra.mxu0 %v146
    %415 = vmatprep.subr.mxu0 0.0
    %416 = vmatpush1.msra.mxu0 %v147
    %417 = vmatprep.subr.mxu0 0.0
    %418 = vmatpush1.msra.mxu0 %v148
    %419 = vmatprep.subr.mxu0 0.0
    %420 = vmatpush1.msra.mxu0 %v149
    %421 = vmatprep.subr.mxu0 0.0
    %422 = vmatpush1.msra.mxu0 %v150
    %423 = vmatprep.subr.mxu0 0.0
    %424 = vmatpush1.msra.mxu0 %v151
    %425 = vmatprep.subr.mxu0 0.0
    %426 = vmatpush1.msra.mxu0 %v152
    %427 = vmatprep.subr.mxu0 0.0
    %428 = vmatpush1.msra.mxu0 %v153
    %429 = vmatprep.subr.mxu0 0.0
    %430 = vmatpush1.msra.mxu0 %v154
    %431 = vmatprep.subr.mxu0 0.0
    %432 = vmatpush1.msra.mxu0 %v155
    %433 = vmatprep.subr.mxu0 0.0
    %434 = vmatpush1.msra.mxu0 %v156
    %435 = vmatprep.subr.mxu0 0.0
    %436 = vmatpush1.msra.mxu0 %v157
    %437 = vmatprep.subr.mxu0 0.0
    %438 = vmatpush1.msra.mxu0 %v158
    %439 = vmatprep.subr.mxu0 0.0
    %440 = vmatpush1.msra.mxu0 %v159
    %441 = vmatprep.subr.mxu0 0.0
    %442 = vmatpush1.msra.mxu0 %v160
    %443 = vmatprep.subr.mxu0 0.0
    %444 = vmatpush1.msra.mxu0 %v161
    %445 = vmatprep.subr.mxu0 0.0
    %446 = vmatpush1.msra.mxu0 %v162
    %447 = vmatprep.subr.mxu0 0.0
    %448 = vmatpush1.msra.mxu0 %v163
    %449 = vmatprep.subr.mxu0 0.0
    %450 = vmatpush1.msra.mxu0 %v164
    %451 = vmatprep.subr.mxu0 0.0
    %452 = vmatpush1.msra.mxu0 %v165
    %453 = vmatprep.subr.mxu0 0.0
    %454 = vmatpush1.msra.mxu0 %v166
    %455 = vmatprep.subr.mxu0 0.0
    %456 = vmatpush1.msra.mxu0 %v167
    %457 = vmatprep.subr.mxu0 0.0
    %458 = vmatpush1.msra.mxu0 %v168
    %459 = vmatprep.subr.mxu0 0.0
    %460 = vmatpush1.msra.mxu0 %v169
    %461 = vmatprep.mubr.f32.mxu0 %v31
    %462 = vmatmul.mubr.f32.gmra.mrb[0].mxu0 %v30
    %v463 = vpop.f32.mrb[0].mxu0
    %v464 = vadd.f32 %v389, %v463
    %v465 = vpop.f32.mrb[0].mxu0
    %466 = vmatprep.mubr.f32.mxu0 %v39
    %467 = vmatmul.mubr.f32.gmra.mrb[0].mxu0 %v38
    %v468 = vpop.f32.mrb[0].mxu0
    %v469 = vadd.f32 %v394, %v468
    %v470 = vpop.f32.mrb[0].mxu0
    %471 = vdwg.mxu0
    %v472 = vadd.f32 %v170, %v464
    %v473 = vadd.f32 %v171, %v469
    %vm474 = vcmask 80896
    %475 = vst.msk [vmem:[#allocation2] sm:$0xff] %vm474, %v472
    %476 = vst.msk [vmem:[#allocation2 + $0x8] sm:$0xff] %vm474, %v473
    %v477 = vsub.f32 %v24, %v32
    %v478 = vsub.f32 %v25, %v33
    %v479 = vsub.f32 %v26, %v34
    %v480 = vsub.f32 %v27, %v35
    %v481 = vsub.f32 %v28, %v36
    %v482 = vsub.f32 %v29, %v37
    %v483 = vsub.f32 %v30, %v38
    %v484 = vsub.f32 %v31, %v39
    %v485 = vld [vmem:[#allocation3] sm:$0xff]
    %v486 = vmul.f32 %v477, %v477
    %v487 = vmul.f32 %v478, %v478
    %v488 = vmul.f32 %v479, %v479
    %v489 = vmul.f32 %v480, %v480
    %v490 = vmul.f32 %v481, %v481
    %v491 = vmul.f32 %v482, %v482
    %v492 = vmul.f32 %v483, %v483
    %v493 = vmul.f32 %v484, %v484
    %v494 = vadd.f32 %v486, %v487
    %v495 = vadd.f32 %v494, %v488
    %v496 = vadd.f32 %v495, %v489
    %v497 = vadd.f32 %v496, %v490
    %v498 = vadd.f32 %v497, %v491
    %v499 = vadd.f32 %v498, %v492
    %v500 = vadd.f32 %v499, %v493
    %501 = vadd.xlane.f32.xlu0 %v500
    %v502 = vpop.xlane.xlu0 %501
    %v503 = vadd.f32 %v485, %v502
    %vm504 = vcmask 7168
    %505 = vst.msk [vmem:[#allocation3] sm:$0xff] %vm504, %v503
    // Predicated region
    $region18: #{tpu_custom_call.1} parent=1 // pred_check
      %p506 = pneg %p15
    $region19: #{tpu_custom_call.1} parent=1 // pred_check_branch
      %508 = sbr.rel (%p506) target = $region21
    $region20: #{tpu_custom_call.1} parent=1 // pred_region
      %v509 = vld [vmem:[%s2] sm:$0x1]
      %v510 = vld [vmem:[#allocation2] sm:$0xff]
      %v512 = vlaneseq
      %v513 = vshrl.u32 %v512, 7
      %v514 = vsub.s32 0, %v513
      %v515 = vrot.slane %v509, %v514
      %v517 = vadd.f32 %v510, %v515
      %v518 = vld [vmem:[#allocation2 + $0x8] sm:$0xff]
      %v519 = vadd.f32 %v518, %v515
      %v520 = vlaneseq
      %v521 = vand.u32 %v520, 127
      %v522 = vsel %vm474, %v517, -inf
      %523 = vmax.xlane.f32.xlu0 %v522
      %v524 = vpop.xlane.xlu0 %523
      %vm525 = vcmp.eq.f32.partialorder %v517, %v524
      %v526 = vsel %vm525, %v521, 10
      %v527 = vsel %vm474, %v526, 2147483647
      %v528 = vand.u32 %v527, 65535
      %v529 = vshra.s32 %v527, 16
      %v530 = vcvt.s32.f32 %v528
      %v531 = vcvt.s32.f32 %v529
      %532 = vmin.xlane.f32.xlu0 %v531
      %v533 = vpop.xlane.xlu0 %532
      %vm534 = vcmp.eq.f32.partialorder %v531, %v533
      %v535 = vsel %vm534, %v530, inf
      %536 = vmin.xlane.f32.xlu0 %v535
      %v537 = vpop.xlane.xlu0 %536
      %v538 = vcvt.f32.s32 %v537
      %v539 = vcvt.f32.s32 %v533
      %v540 = vshll.u32 %v539, 16
      %v541 = vadd.s32 %v540, %v538
      %vm542 = vcmp.eq.s32.totalorder %v521, %v541
      %v543 = vsel %vm542, %v519, 0.0
      %v544 = vsel %vm474, %v543, 0.0
      %545 = vadd.xlane.f32.xlu0 %v544
      %v546 = vpop.xlane.xlu0 %545
      %v547 = vsub.f32 %v524, %v517
      %v548 = vsub.f32 %v546, %v519
      %v549 = vld [vmem:[#allocation3] sm:$0xff]
      %v550 = vrsqrt.pop %v549
      %v551 = vmul.f32 %v549, %v550
      %vm552 = vcmp.eq.f32.partialorder %v549, inf
      %v553 = vsel %vm552, %v549, %v551
      %vm554 = vcmp.eq.f32.partialorder %v549, 0.0
      %v555 = vand.u32 %v549, 2147483648
      %v556 = vsel %vm554, %v555, %v553
      %v557 = vrcp.pop %v556
      %v558 = vmul.f32 1.0, %v557
      %v559 = vsub.f32 %v547, %v548
      %v560 = vand.u32 2147483647, %v559
      %562 = vset.pattern.permute.xlu0 0
      %563 = vperm.xlu0 %562, %v558
      %v564 = vpop.permute.xlu0 %563
      %v566 = vmul.f32 %v560, %v564
      %v567 = vsel %vm474, %v566, -inf
      %568 = vmax.xlane.f32.xlu0 %v567
      %v569 = vpop.xlane.xlu0 %568
      %v570 = vsub.f32 0.0, %v569
      %v572 = vlaneseq
      %v573 = vshrl.u32 %v572, 7
      %v574 = vsub.s32 %v521, %v573
      %v575 = vrot.slane %v570, %v574
      %vm577 = vcmask 57344
      %578 = vst.msk [vmem:[#allocation4] sm:$0x1] %vm577, %v575
    $region21: #{tpu_custom_call.1} parent=1 // pred_fallthru
      _
    // Predicated region
    $region22: #{tpu_custom_call.1} parent=1 // pred_check
      _
    $region23: #{tpu_custom_call.1} parent=1 // pred_check_branch
      %580 = sbr.rel (0) target = $region25
    $region24: #{tpu_custom_call.1} parent=1 // pred_region
      %s582 = ssub.s32 16, 16
      %583 = vsyncadd [#allocation5], %s582
      %s585 = sshll.u32 [#allocation4], 4
      %s586 = int_to_ptr.vmem [resolvable:$true] %s585
      %588 = dma.vmem_to_hbm [thread:$0]  %s586, 16, %s3, [#allocation5]
    $region25: #{tpu_custom_call.1} parent=1 // pred_fallthru
      _
    // Predicated region
    $region26: #{tpu_custom_call.1} parent=1 // pred_check
      _
    $region27: #{tpu_custom_call.1} parent=1 // pred_check_branch
      %590 = sbr.rel (0) target = $region29
    $region28: #{tpu_custom_call.1} parent=1 // pred_region
      %591 = dma.done [#allocation5], 16
    $region29: #{tpu_custom_call.1} parent=1 // pred_fallthru
      _
    %592 = vsyncpa [#allocation5], 1

</llo_original>
